<compile_context>
chip_gen: v5e
topology: v5e:2x2
jax: 0.10.0
libtpu: 0.0.40
codegen_flags: <defaults>
</compile_context>

<pallas_src>
import functools

import jax
import jax.numpy as jnp
from jax import lax
from jax.experimental import pallas as pl
from jax.experimental.pallas import tpu as pltpu

BN_EPS = 1e-5
L2_EPS = 1e-12
_LANE = 128
_SUBLANE = 8
_VMEM_LIMIT = 32 * 1024 * 1024   # stay within the scoped default on v5e/v6e/v7x
_VMEM_BUDGET = 24 * 1024 * 1024  # planning budget (headroom below the limit)


def _round_up(x, m):
    return ((x + m - 1) // m) * m


def _pick_tm(n, d, dp, in_bytes):
    """Largest batch tile whose double-buffered working set fits the budget."""
    n8 = _round_up(max(n, 1), _SUBLANE)
    w_bytes = 2 * (2 * d * dp * 2)              # w1 + w2, bf16, double-buffered
    per_row = 4 * d * in_bytes + 16 * dp        # f1+f2 (dbl-buf) + y/out (dbl-buf)
    if n8 <= 1024 and w_bytes + n8 * per_row <= _VMEM_BUDGET:
        return n8                               # whole batch in one tile, no grid loop
    tm = _SUBLANE
    for cand in (16, 32, 64, 128, 256, 512, 1024):
        if w_bytes + cand * per_row > _VMEM_BUDGET:
            break
        tm = cand
    return tm


# --------------------------------------------------------------------------
# Pass 1: y = f1 @ w1 + f2 @ w2 (bf16 MXU, f32 acc) + column sum / sum-of-sq.
# Stats outputs keep the same block across the batch grid axis (resident
# accumulators), so that axis is "arbitrary".
# --------------------------------------------------------------------------
def _matmul_stats_kernel(f1_ref, f2_ref, w1_ref, w2_ref, y_ref, sum_ref, ssq_ref):
    f1 = f1_ref[...].astype(jnp.bfloat16)       # cast at the dot only
    f2 = f2_ref[...].astype(jnp.bfloat16)
    y = jnp.dot(f1, w1_ref[...], preferred_element_type=jnp.float32)
    y = y + jnp.dot(f2, w2_ref[...], preferred_element_type=jnp.float32)
    y_ref[...] = y

    @pl.when(pl.program_id(0) == 0)
    def _():
        sum_ref[...] = jnp.zeros_like(sum_ref)
        ssq_ref[...] = jnp.zeros_like(ssq_ref)

    sum_ref[...] += jnp.sum(y, axis=0, keepdims=True)
    ssq_ref[...] += jnp.sum(y * y, axis=0, keepdims=True)


# --------------------------------------------------------------------------
# Pass 2: fold BN stats -> (scale, shift) in-kernel, apply (1 mul + 1 add),
# then L2 row-normalize via rsqrt.  No cross-tile dependence -> "parallel".
# The y input is aliased to the output buffer (in-place).
# --------------------------------------------------------------------------
def _bn_l2_kernel(y_ref, sum_ref, ssq_ref, gamma_ref, beta_ref, o_ref, *, inv_n):
    mean = sum_ref[...] * inv_n
    var = jnp.maximum(ssq_ref[...] * inv_n - mean * mean, 0.0)   # biased variance
    scale = gamma_ref[...] * lax.rsqrt(var + BN_EPS)
    shift = beta_ref[...] - mean * scale
    z = y_ref[...] * scale + shift
    ssq = jnp.sum(z * z, axis=1, keepdims=True)
    inv = lax.rsqrt(jnp.maximum(ssq, L2_EPS * L2_EPS))           # == 1/max(||z||, 1e-12)
    o_ref[...] = z * inv


def prepare_params(w, b, gamma, beta):
    """One-time parameter preprocessing (NOT on the per-call hot path).

    w: (D, 2D) torch Linear weight (out_features, in_features); b: (D,);
    gamma/beta: (D,) BatchNorm affine params.
    Returns split / transposed bf16 weights padded to a lane-dense output
    width Dp (multiple of 128) plus (1, Dp) f32 gamma/beta.
    The Linear bias is dropped: under training-mode BN it cancels exactly in
    the mean subtraction, so the forward output is unchanged.
    """
    d = w.shape[0]
    assert w.shape == (d, 2 * d)
    dp = _round_up(d, _LANE)
    pad = dp - d

    w1 = jnp.transpose(w[:, :d]).astype(jnp.float32)   # (D_in1, D_out)
    w2 = jnp.transpose(w[:, d:]).astype(jnp.float32)   # (D_in2, D_out)
    w1 = jnp.pad(w1, ((0, 0), (0, pad)))                # zero output columns
    w2 = jnp.pad(w2, ((0, 0), (0, pad)))
    w1 = w1.astype(jnp.bfloat16)
    w2 = w2.astype(jnp.bfloat16)

    gamma_p = jnp.pad(gamma.astype(jnp.float32), (0, pad),
                      constant_values=1.0).reshape(1, dp)
    beta_p = jnp.pad(beta.astype(jnp.float32), (0, pad),
                     constant_values=0.0).reshape(1, dp)
    del b  # provably cancels under training-mode BN
    return {"w1": w1, "w2": w2, "gamma": gamma_p, "beta": beta_p}


def embedding_model_forward(features1, features2, params):
    """features1, features2: (N, D); returns (N, D) float32."""
    n, d = features1.shape
    w1, w2 = params["w1"], params["w2"]
    gamma, beta = params["gamma"], params["beta"]
    assert features2.shape == (n, d)
    assert w1.shape[0] == d and w2.shape[0] == d
    dp = w1.shape[1]

    in_bytes = jnp.dtype(features1.dtype).itemsize
    tm = _pick_tm(n, d, dp, in_bytes)
    n_pad = _round_up(n, tm)

    f1, f2 = features1, features2
    if n_pad != n:
        # Zero rows contribute exactly 0 to y (no bias), so the column stats
        # divided by the *true* N below stay exact.
        f1 = jnp.pad(f1, ((0, n_pad - n), (0, 0)))
        f2 = jnp.pad(f2, ((0, n_pad - n), (0, 0)))

    grid = (n_pad // tm,)

    # ---- Pass 1: matmul + column stats --------------------------------------
    y, colsum, colssq = pl.pallas_call(
        _matmul_stats_kernel,
        grid=grid,
        in_specs=[
            pl.BlockSpec((tm, d), lambda i: (i, 0)),
            pl.BlockSpec((tm, d), lambda i: (i, 0)),
            pl.BlockSpec((d, dp), lambda i: (0, 0)),
            pl.BlockSpec((d, dp), lambda i: (0, 0)),
        ],
        out_specs=(
            pl.BlockSpec((tm, dp), lambda i: (i, 0)),
            pl.BlockSpec((1, dp), lambda i: (0, 0)),   # resident accumulator
            pl.BlockSpec((1, dp), lambda i: (0, 0)),   # resident accumulator
        ),
        out_shape=(
            jax.ShapeDtypeStruct((n_pad, dp), jnp.float32),
            jax.ShapeDtypeStruct((1, dp), jnp.float32),
            jax.ShapeDtypeStruct((1, dp), jnp.float32),
        ),
        compiler_params=pltpu.CompilerParams(
            dimension_semantics=("arbitrary",),
            vmem_limit_bytes=_VMEM_LIMIT,
        ),
    )(f1, f2, w1, w2)

    # ---- Pass 2: BN fold + apply + L2 normalize, in place over y ------------
    out = pl.pallas_call(
        functools.partial(_bn_l2_kernel, inv_n=1.0 / n),   # true batch size
        grid=grid,
        in_specs=[
            pl.BlockSpec((tm, dp), lambda i: (i, 0)),
            pl.BlockSpec((1, dp), lambda i: (0, 0)),
            pl.BlockSpec((1, dp), lambda i: (0, 0)),
            pl.BlockSpec((1, dp), lambda i: (0, 0)),
            pl.BlockSpec((1, dp), lambda i: (0, 0)),
        ],
        out_specs=pl.BlockSpec((tm, dp), lambda i: (i, 0)),
        out_shape=jax.ShapeDtypeStruct((n_pad, dp), jnp.float32),
        input_output_aliases={0: 0},                       # reuse the y buffer
        compiler_params=pltpu.CompilerParams(
            dimension_semantics=("parallel",),
            vmem_limit_bytes=_VMEM_LIMIT,
        ),
    )(y, colsum, colssq, gamma, beta)

    if n_pad != n or dp != d:
        out = out[:n, :d]
    return out


def init_params(key, d_model):
    """Deterministic init matching the module's __init__ (torch layout)."""
    (kw,) = jax.random.split(key, 1)
    fan_out = d_model  # kaiming_normal_(mode='fan_out') on (d_model, 2*d_model)
    std = (2.0 / fan_out) ** 0.5
    w = std * jax.random.normal(kw, (d_model, 2 * d_model), dtype=jnp.float32)
    b = jnp.zeros((d_model,), dtype=jnp.float32)          # init.constant_(bias, 0)
    gamma = jnp.ones((d_model,), dtype=jnp.float32)       # BN default weight
    beta = jnp.zeros((d_model,), dtype=jnp.float32)       # BN bias (frozen, 0)
    return w, b, gamma, beta


def _reference_forward(f1, f2, w, b, gamma, beta):
    """Pure-JAX f32 reference of the PyTorch forward (training-mode BN)."""
    x = jnp.concatenate([f1, f2], axis=1).astype(jnp.float32)
    y = x @ w.T.astype(jnp.float32) + b
    mean = jnp.mean(y, axis=0, keepdims=True)
    var = jnp.mean((y - mean) ** 2, axis=0, keepdims=True)
    y = (y - mean) * lax.rsqrt(var + BN_EPS) * gamma + beta
    norm = jnp.linalg.norm(y, axis=1, keepdims=True)
    return y / jnp.maximum(norm, L2_EPS)


if __name__ == "__main__":
    d_model = 32
    batch = 8

    key = jax.random.PRNGKey(0)
    k1, k2, kp = jax.random.split(key, 3)
    features1 = jax.random.normal(k1, (batch, d_model), dtype=jnp.float32)
    features2 = jax.random.normal(k2, (batch, d_model), dtype=jnp.float32)
    w, b, gamma, beta = init_params(kp, d_model)

    params = prepare_params(w, b, gamma, beta)   # one-time, off the hot path
    fwd = jax.jit(embedding_model_forward)
    out = jax.block_until_ready(fwd(features1, features2, params))

    assert out.shape == (batch, d_model)
    assert bool(jnp.all(jnp.isfinite(out)))
    # Rows should be unit-norm after F.normalize.
    row_norms = jnp.linalg.norm(out, axis=1)
    assert jnp.allclose(row_norms, 1.0, atol=2e-3)
    # Match the f32 reference within bf16-matmul tolerance.
    ref = _reference_forward(features1, features2, w, b, gamma, beta)
    assert float(jnp.max(jnp.abs(out - ref))) < 3e-2

    print("KERNEL_OK")
</pallas_src>

<mosaic_0001>
module attributes {stable_mosaic.version = 11 : i64} {
  func.func @_bn_l2_kernel(%arg0: i32, %arg1: memref<8x128xf32, #tpu.memory_space<vmem>>, %arg2: memref<1x128xf32, #tpu.memory_space<vmem>>, %arg3: memref<1x128xf32, #tpu.memory_space<vmem>>, %arg4: memref<1x128xf32, #tpu.memory_space<vmem>>, %arg5: memref<1x128xf32, #tpu.memory_space<vmem>>, %arg6: memref<8x128xf32, #tpu.memory_space<vmem>>) attributes {dimension_semantics = [#tpu.dimension_semantics<parallel>], iteration_bounds = array<i64: 1>, scalar_prefetch = 0 : i64, scratch_operands = 0 : i64, tpu.core_type = #tpu.core_type<tc>, window_params = [{transform_indices = @transform_0, window_bounds = array<i64: 8, 128>}, {pipeline_mode = #tpu.pipeline_mode<synchronous>, transform_indices = @transform_1, window_bounds = array<i64: 1, 128>}, {pipeline_mode = #tpu.pipeline_mode<synchronous>, transform_indices = @transform_2, window_bounds = array<i64: 1, 128>}, {pipeline_mode = #tpu.pipeline_mode<synchronous>, transform_indices = @transform_3, window_bounds = array<i64: 1, 128>}, {pipeline_mode = #tpu.pipeline_mode<synchronous>, transform_indices = @transform_4, window_bounds = array<i64: 1, 128>}, {transform_indices = @transform_5, window_bounds = array<i64: 8, 128>}]} {
    %c0 = arith.constant 0 : index
    %c0_0 = arith.constant 0 : index
    %0 = vector.load %arg2[%c0, %c0_0] : memref<1x128xf32, #tpu.memory_space<vmem>>, vector<1x128xf32>
    %cst = arith.constant 1.250000e-01 : f32
    %1 = vector.broadcast %cst : f32 to vector<1x128xf32>
    %2 = arith.mulf %0, %1 : vector<1x128xf32>
    %c0_1 = arith.constant 0 : index
    %c0_2 = arith.constant 0 : index
    %3 = vector.load %arg3[%c0_1, %c0_2] : memref<1x128xf32, #tpu.memory_space<vmem>>, vector<1x128xf32>
    %cst_3 = arith.constant 1.250000e-01 : f32
    %4 = vector.broadcast %cst_3 : f32 to vector<1x128xf32>
    %5 = arith.mulf %3, %4 : vector<1x128xf32>
    %6 = arith.mulf %2, %2 : vector<1x128xf32>
    %7 = arith.subf %5, %6 : vector<1x128xf32>
    %cst_4 = arith.constant 0.000000e+00 : f32
    %8 = vector.broadcast %cst_4 : f32 to vector<1x128xf32>
    %9 = arith.maximumf %7, %8 : vector<1x128xf32>
    %c0_5 = arith.constant 0 : index
    %c0_6 = arith.constant 0 : index
    %10 = vector.load %arg4[%c0_5, %c0_6] : memref<1x128xf32, #tpu.memory_space<vmem>>, vector<1x128xf32>
    %cst_7 = arith.constant 9.99999974E-6 : f32
    %11 = vector.broadcast %cst_7 : f32 to vector<1x128xf32>
    %12 = arith.addf %9, %11 : vector<1x128xf32>
    %13 = math.rsqrt %12 : vector<1x128xf32>
    %14 = arith.mulf %10, %13 : vector<1x128xf32>
    %c0_8 = arith.constant 0 : index
    %c0_9 = arith.constant 0 : index
    %15 = vector.load %arg5[%c0_8, %c0_9] : memref<1x128xf32, #tpu.memory_space<vmem>>, vector<1x128xf32>
    %16 = arith.mulf %2, %14 : vector<1x128xf32>
    %17 = arith.subf %15, %16 : vector<1x128xf32>
    %c0_10 = arith.constant 0 : index
    %c0_11 = arith.constant 0 : index
    %18 = vector.load %arg1[%c0_10, %c0_11] : memref<8x128xf32, #tpu.memory_space<vmem>>, vector<8x128xf32>
    %19 = vector.broadcast %14 : vector<1x128xf32> to vector<8x128xf32>
    %20 = arith.mulf %18, %19 : vector<8x128xf32>
    %21 = vector.broadcast %17 : vector<1x128xf32> to vector<8x128xf32>
    %22 = arith.addf %20, %21 : vector<8x128xf32>
    %23 = arith.mulf %22, %22 : vector<8x128xf32>
    %cst_12 = arith.constant dense<0.000000e+00> : vector<8xf32>
    %24 = vector.multi_reduction <add>, %23, %cst_12 [1] : vector<8x128xf32> to vector<8xf32>
    %25 = vector.shape_cast %24 : vector<8xf32> to vector<8x1xf32>
    %cst_13 = arith.constant 1.000000e-24 : f32
    %26 = vector.broadcast %cst_13 : f32 to vector<8x1xf32>
    %27 = arith.maximumf %25, %26 : vector<8x1xf32>
    %28 = math.rsqrt %27 : vector<8x1xf32>
    %29 = vector.broadcast %28 : vector<8x1xf32> to vector<8x128xf32>
    %30 = arith.mulf %22, %29 : vector<8x128xf32>
    %c0_14 = arith.constant 0 : index
    %c0_15 = arith.constant 0 : index
    %31 = vector.load %arg6[%c0_14, %c0_15] : memref<8x128xf32, #tpu.memory_space<vmem>>, vector<8x128xf32>
    tpu.vector_store %arg6[%c0_14, %c0_15], %30 {strides = array<i32>} : memref<8x128xf32, #tpu.memory_space<vmem>>, vector<8x128xf32>,
    return
  }
  func.func @transform_0(%arg0: i32) -> (i32, i32) {
    %c0_i32 = arith.constant 0 : i32
    %c0_i32_0 = arith.constant 0 : i32
    return %arg0, %c0_i32 : i32, i32
  }
  func.func @transform_1(%arg0: i32) -> (i32, i32) {
    %c0_i32 = arith.constant 0 : i32
    %c0_i32_0 = arith.constant 0 : i32
    %c0_i32_1 = arith.constant 0 : i32
    return %c0_i32, %c0_i32_0 : i32, i32
  }
  func.func @transform_2(%arg0: i32) -> (i32, i32) {
    %c0_i32 = arith.constant 0 : i32
    %c0_i32_0 = arith.constant 0 : i32
    %c0_i32_1 = arith.constant 0 : i32
    return %c0_i32, %c0_i32_0 : i32, i32
  }
  func.func @transform_3(%arg0: i32) -> (i32, i32) {
    %c0_i32 = arith.constant 0 : i32
    %c0_i32_0 = arith.constant 0 : i32
    %c0_i32_1 = arith.constant 0 : i32
    return %c0_i32, %c0_i32_0 : i32, i32
  }
  func.func @transform_4(%arg0: i32) -> (i32, i32) {
    %c0_i32 = arith.constant 0 : i32
    %c0_i32_0 = arith.constant 0 : i32
    %c0_i32_1 = arith.constant 0 : i32
    return %c0_i32, %c0_i32_0 : i32, i32
  }
  func.func @transform_5(%arg0: i32) -> (i32, i32) {
    %c0_i32 = arith.constant 0 : i32
    %c0_i32_0 = arith.constant 0 : i32
    return %arg0, %c0_i32 : i32, i32
  }
}

module attributes {stable_mosaic.version = 11 : i64} {
  func.func @_matmul_stats_kernel(%arg0: i32, %arg1: memref<8x32xf32, #tpu.memory_space<vmem>>, %arg2: memref<8x32xf32, #tpu.memory_space<vmem>>, %arg3: memref<32x128xbf16, #tpu.memory_space<vmem>>, %arg4: memref<32x128xbf16, #tpu.memory_space<vmem>>, %arg5: memref<8x128xf32, #tpu.memory_space<vmem>>, %arg6: memref<1x128xf32, #tpu.memory_space<vmem>>, %arg7: memref<1x128xf32, #tpu.memory_space<vmem>>) attributes {dimension_semantics = [#tpu.dimension_semantics<arbitrary>], iteration_bounds = array<i64: 1>, scalar_prefetch = 0 : i64, scratch_operands = 0 : i64, tpu.core_type = #tpu.core_type<tc>, window_params = [{transform_indices = @transform_0, window_bounds = array<i64: 8, 32>}, {transform_indices = @transform_1, window_bounds = array<i64: 8, 32>}, {pipeline_mode = #tpu.pipeline_mode<synchronous>, transform_indices = @transform_2, window_bounds = array<i64: 32, 128>}, {pipeline_mode = #tpu.pipeline_mode<synchronous>, transform_indices = @transform_3, window_bounds = array<i64: 32, 128>}, {transform_indices = @transform_4, window_bounds = array<i64: 8, 128>}, {pipeline_mode = #tpu.pipeline_mode<synchronous>, transform_indices = @transform_5, window_bounds = array<i64: 1, 128>}, {pipeline_mode = #tpu.pipeline_mode<synchronous>, transform_indices = @transform_6, window_bounds = array<i64: 1, 128>}]} {
    %c0 = arith.constant 0 : index
    %c0_0 = arith.constant 0 : index
    %0 = vector.load %arg1[%c0, %c0_0] : memref<8x32xf32, #tpu.memory_space<vmem>>, vector<8x32xf32>
    %1 = arith.truncf %0 : vector<8x32xf32> to vector<8x32xbf16>
    %c0_1 = arith.constant 0 : index
    %c0_2 = arith.constant 0 : index
    %2 = vector.load %arg2[%c0_1, %c0_2] : memref<8x32xf32, #tpu.memory_space<vmem>>, vector<8x32xf32>
    %3 = arith.truncf %2 : vector<8x32xf32> to vector<8x32xbf16>
    %c0_3 = arith.constant 0 : index
    %c0_4 = arith.constant 0 : index
    %4 = vector.load %arg3[%c0_3, %c0_4] : memref<32x128xbf16, #tpu.memory_space<vmem>>, vector<32x128xbf16>
    %cst = arith.constant dense<0.000000e+00> : vector<8x128xf32>
    %5 = tpu.matmul %1, %4, %cst {dimension_numbers = #tpu.dot_dimension_numbers<[1], [0], [0], [1], [0, 0, 1, 1], [], []>} : vector<8x32xbf16>, vector<32x128xbf16>, vector<8x128xf32> -> vector<8x128xf32>
    %c0_5 = arith.constant 0 : index
    %c0_6 = arith.constant 0 : index
    %6 = vector.load %arg4[%c0_5, %c0_6] : memref<32x128xbf16, #tpu.memory_space<vmem>>, vector<32x128xbf16>
    %cst_7 = arith.constant dense<0.000000e+00> : vector<8x128xf32>
    %7 = tpu.matmul %3, %6, %cst_7 {dimension_numbers = #tpu.dot_dimension_numbers<[1], [0], [0], [1], [0, 0, 1, 1], [], []>} : vector<8x32xbf16>, vector<32x128xbf16>, vector<8x128xf32> -> vector<8x128xf32>
    %8 = arith.addf %5, %7 : vector<8x128xf32>
    %c0_8 = arith.constant 0 : index
    %c0_9 = arith.constant 0 : index
    %9 = vector.load %arg5[%c0_8, %c0_9] : memref<8x128xf32, #tpu.memory_space<vmem>>, vector<8x128xf32>
    tpu.vector_store %arg5[%c0_8, %c0_9], %8 {strides = array<i32>} : memref<8x128xf32, #tpu.memory_space<vmem>>, vector<8x128xf32>,
    %c0_i32 = arith.constant 0 : i32
    %10 = arith.cmpi eq, %arg0, %c0_i32 : i32
    %11 = arith.extui %10 : i1 to i32
    %c0_i32_10 = arith.constant 0 : i32
    %12 = arith.cmpi ne, %11, %c0_i32_10 : i32
    scf.if %12 {
      %cst_21 = arith.constant 0.000000e+00 : f32
      %24 = vector.broadcast %cst_21 : f32 to vector<1x128xf32>
      %c0_22 = arith.constant 0 : index
      %c0_23 = arith.constant 0 : index
      %25 = vector.load %arg6[%c0_22, %c0_23] : memref<1x128xf32, #tpu.memory_space<vmem>>, vector<1x128xf32>
      tpu.vector_store %arg6[%c0_22, %c0_23], %24 {strides = array<i32>} : memref<1x128xf32, #tpu.memory_space<vmem>>, vector<1x128xf32>,
      %cst_24 = arith.constant 0.000000e+00 : f32
      %26 = vector.broadcast %cst_24 : f32 to vector<1x128xf32>
      %c0_25 = arith.constant 0 : index
      %c0_26 = arith.constant 0 : index
      %27 = vector.load %arg7[%c0_25, %c0_26] : memref<1x128xf32, #tpu.memory_space<vmem>>, vector<1x128xf32>
      tpu.vector_store %arg7[%c0_25, %c0_26], %26 {strides = array<i32>} : memref<1x128xf32, #tpu.memory_space<vmem>>, vector<1x128xf32>,
    } else {
    }
    %c0_11 = arith.constant 0 : index
    %c0_12 = arith.constant 0 : index
    %13 = vector.load %arg6[%c0_11, %c0_12] : memref<1x128xf32, #tpu.memory_space<vmem>>, vector<1x128xf32>
    %cst_13 = arith.constant dense<0.000000e+00> : vector<128xf32>
    %14 = vector.multi_reduction <add>, %8, %cst_13 [0] : vector<8x128xf32> to vector<128xf32>
    %15 = vector.shape_cast %14 : vector<128xf32> to vector<1x128xf32>
    %16 = arith.addf %13, %15 : vector<1x128xf32>
    %c0_14 = arith.constant 0 : index
    %c0_15 = arith.constant 0 : index
    %17 = vector.load %arg6[%c0_14, %c0_15] : memref<1x128xf32, #tpu.memory_space<vmem>>, vector<1x128xf32>
    tpu.vector_store %arg6[%c0_14, %c0_15], %16 {strides = array<i32>} : memref<1x128xf32, #tpu.memory_space<vmem>>, vector<1x128xf32>,
    %c0_16 = arith.constant 0 : index
    %c0_17 = arith.constant 0 : index
    %18 = vector.load %arg7[%c0_16, %c0_17] : memref<1x128xf32, #tpu.memory_space<vmem>>, vector<1x128xf32>
    %19 = arith.mulf %8, %8 : vector<8x128xf32>
    %cst_18 = arith.constant dense<0.000000e+00> : vector<128xf32>
    %20 = vector.multi_reduction <add>, %19, %cst_18 [0] : vector<8x128xf32> to vector<128xf32>
    %21 = vector.shape_cast %20 : vector<128xf32> to vector<1x128xf32>
    %22 = arith.addf %18, %21 : vector<1x128xf32>
    %c0_19 = arith.constant 0 : index
    %c0_20 = arith.constant 0 : index
    %23 = vector.load %arg7[%c0_19, %c0_20] : memref<1x128xf32, #tpu.memory_space<vmem>>, vector<1x128xf32>
    tpu.vector_store %arg7[%c0_19, %c0_20], %22 {strides = array<i32>} : memref<1x128xf32, #tpu.memory_space<vmem>>, vector<1x128xf32>,
    return
  }
  func.func @transform_0(%arg0: i32) -> (i32, i32) {
    %c0_i32 = arith.constant 0 : i32
    %c0_i32_0 = arith.constant 0 : i32
    return %arg0, %c0_i32 : i32, i32
  }
  func.func @transform_1(%arg0: i32) -> (i32, i32) {
    %c0_i32 = arith.constant 0 : i32
    %c0_i32_0 = arith.constant 0 : i32
    return %arg0, %c0_i32 : i32, i32
  }
  func.func @transform_2(%arg0: i32) -> (i32, i32) {
    %c0_i32 = arith.constant 0 : i32
    %c0_i32_0 = arith.constant 0 : i32
    %c0_i32_1 = arith.constant 0 : i32
    return %c0_i32, %c0_i32_0 : i32, i32
  }
  func.func @transform_3(%arg0: i32) -> (i32, i32) {
    %c0_i32 = arith.constant 0 : i32
    %c0_i32_0 = arith.constant 0 : i32
    %c0_i32_1 = arith.constant 0 : i32
    return %c0_i32, %c0_i32_0 : i32, i32
  }
  func.func @transform_4(%arg0: i32) -> (i32, i32) {
    %c0_i32 = arith.constant 0 : i32
    %c0_i32_0 = arith.constant 0 : i32
    return %arg0, %c0_i32 : i32, i32
  }
  func.func @transform_5(%arg0: i32) -> (i32, i32) {
    %c0_i32 = arith.constant 0 : i32
    %c0_i32_0 = arith.constant 0 : i32
    %c0_i32_1 = arith.constant 0 : i32
    return %c0_i32, %c0_i32_0 : i32, i32
  }
  func.func @transform_6(%arg0: i32) -> (i32, i32) {
    %c0_i32 = arith.constant 0 : i32
    %c0_i32_0 = arith.constant 0 : i32
    %c0_i32_1 = arith.constant 0 : i32
    return %c0_i32, %c0_i32_0 : i32, i32
  }
}

</mosaic_0001>

<llo_original>
// kernel: embedding_model_forward.3
$region0: #{embedding_model_forward.3}
  #allocation0 [shape = 'u32[]', space=smem, size = 0x4, offset = 0x4, fixed_abs, tag = 'smem constant byte address 0x4 - core index']
  #allocation1 [shape = 'u32[72,128]{1,0:T(1,128)}', space=vmem, size = 0x9000, scoped, tag = 'internal scratch']
  %s0 = inlined_call_operand.vmem [shape: f32[8,128], index: 0, kind: input, shape index: {}, may-alias: {0,5}]
  %s1 = inlined_call_operand.vmem [shape: f32[1,128], index: 1, kind: input, shape index: {}]
  %s2 = inlined_call_operand.vmem [shape: f32[1,128], index: 2, kind: input, shape index: {}]
  %s3 = inlined_call_operand.vmem [shape: f32[1,128], index: 3, kind: input, shape index: {}]
  %s4 = inlined_call_operand.vmem [shape: f32[1,128], index: 4, kind: input, shape index: {}]
  %s5 = inlined_call_operand.vmem [shape: f32[8,128], index: 5, kind: output, shape index: {}, may-alias: {0,5}]
  %s6 = sld [smem:[#allocation0]]
  $region30: #{embedding_model_forward.3} parent=0
    _
  %s8 = ssub.s32 1, %s6
  %s9 = scalar_select 0, %s8, %s6
  // Predicated region
  $region2: #{embedding_model_forward.3} parent=0 // pred_check
    _
  $region3: #{embedding_model_forward.3} parent=0 // pred_check_branch
    %11 = sbr.rel (0) target = $region5
  $region4: #{embedding_model_forward.3} parent=0 // pred_region
    _
  $region5: #{embedding_model_forward.3} parent=0 // pred_fallthru
    _
  // Predicated region
  $region6: #{embedding_model_forward.3} parent=0 // pred_check
    _
  $region7: #{embedding_model_forward.3} parent=0 // pred_check_branch
    %13 = sbr.rel (0) target = $region9
  $region8: #{embedding_model_forward.3} parent=0 // pred_region
    _
  $region9: #{embedding_model_forward.3} parent=0 // pred_fallthru
    _
  // Predicated region
  $region10: #{embedding_model_forward.3} parent=0 // pred_check
    _
  $region11: #{embedding_model_forward.3} parent=0 // pred_check_branch
    %15 = sbr.rel (0) target = $region13
  $region12: #{embedding_model_forward.3} parent=0 // pred_region
    _
  $region13: #{embedding_model_forward.3} parent=0 // pred_fallthru
    _
  // Predicated region
  $region14: #{embedding_model_forward.3} parent=0 // pred_check
    _
  $region15: #{embedding_model_forward.3} parent=0 // pred_check_branch
    %17 = sbr.rel (0) target = $region17
  $region16: #{embedding_model_forward.3} parent=0 // pred_region
    _
  $region17: #{embedding_model_forward.3} parent=0 // pred_fallthru
    _
  // Predicated region
  $region18: #{embedding_model_forward.3} parent=0 // pred_check
    _
  $region19: #{embedding_model_forward.3} parent=0 // pred_check_branch
    %19 = sbr.rel (0) target = $region21
  $region20: #{embedding_model_forward.3} parent=0 // pred_region
    _
  $region21: #{embedding_model_forward.3} parent=0 // pred_fallthru
    _
  %v20 = vld [vmem:[%s1] sm:$0x1]
  %v21 = vmul.f32 %v20, 0.125
  %v22 = vld [vmem:[%s2] sm:$0x1]
  %v23 = vmul.f32 %v22, 0.125
  %v24 = vmul.f32 %v21, %v21
  %v25 = vsub.f32 %v23, %v24
  %v26 = vmax.f32 %v25, 0.0
  %v27 = vld [vmem:[%s3] sm:$0x1]
  %v28 = vadd.f32 %v26, 1e-05
  %v29 = vrsqrt.pop %v28
  %v30 = vmul.f32 %v29, %v28
  %v31 = vmul.f32 %v30, %v29
  %v32 = vmul.f32 0.5, %v31
  %v33 = vsub.f32 1.5, %v32
  %v34 = vmul.f32 %v29, %v33
  %vm35 = vweird.f32 %v28
  %vm36 = vweird.f32 %v29
  %vm37 = vmor %vm35, %vm36
  %v38 = vsel %vm37, %v29, %v34
  %v39 = vmul.f32 %v27, %v38
  %v40 = vld [vmem:[%s4] sm:$0x1]
  %v41 = vmul.f32 %v21, %v39
  %v42 = vsub.f32 %v40, %v41
  %v43 = vld [vmem:[%s0] sm:$0xff]
  %v45 = vperm.slane %v39, 0
  %v47 = vmul.f32 %v43, %v45
  %v49 = vperm.slane %v42, 0
  %v51 = vadd.f32 %v47, %v49
  %v52 = vmul.f32 %v51, %v51
  %53 = vadd.xlane.f32.xlu0 %v52
  %v54 = vpop.xlane.xlu0 %53
  %v55 = vmax.f32 %v54, 1e-24
  %v56 = vrsqrt.pop %v55
  %v57 = vmul.f32 %v56, %v55
  %v58 = vmul.f32 %v57, %v56
  %v59 = vmul.f32 0.5, %v58
  %v60 = vsub.f32 1.5, %v59
  %v61 = vmul.f32 %v56, %v60
  %vm62 = vweird.f32 %v55
  %vm63 = vweird.f32 %v56
  %vm64 = vmor %vm62, %vm63
  %v65 = vsel %vm64, %v56, %v61
  %v66 = vmul.f32 %v51, %v65
  %67 = vst [vmem:[%s5] sm:$0xff] %v66
  // Predicated region
  $region22: #{embedding_model_forward.3} parent=0 // pred_check
    _
  $region23: #{embedding_model_forward.3} parent=0 // pred_check_branch
    %69 = sbr.rel (0) target = $region25
  $region24: #{embedding_model_forward.3} parent=0 // pred_region
    _
  $region25: #{embedding_model_forward.3} parent=0 // pred_fallthru
    _
  // Predicated region
  $region26: #{embedding_model_forward.3} parent=0 // pred_check
    _
  $region27: #{embedding_model_forward.3} parent=0 // pred_check_branch
    %71 = sbr.rel (0) target = $region29
  $region28: #{embedding_model_forward.3} parent=0 // pred_region
    _
  $region29: #{embedding_model_forward.3} parent=0 // pred_fallthru
    _

// kernel: embedding_model_forward.2
$region0: #{embedding_model_forward.2}
  #allocation0 [shape = 'u32[]', space=smem, size = 0x4, offset = 0x4, fixed_abs, tag = 'smem constant byte address 0x4 - core index']
  #allocation1 [shape = 'u32[72,128]{1,0:T(1,128)}', space=vmem, size = 0x9000, scoped, tag = 'internal scratch']
  %s0 = inlined_call_operand.hbm [shape: f32[8,32], index: 0, kind: input, shape index: {}]
  %s1 = inlined_call_operand.hbm [shape: f32[8,32], index: 1, kind: input, shape index: {}]
  %s2 = inlined_call_operand.hbm [shape: bf16[32,128], index: 2, kind: input, shape index: {}]
  %s3 = inlined_call_operand.hbm [shape: bf16[32,128], index: 3, kind: input, shape index: {}]
  %s4 = inlined_call_operand.vmem [shape: f32[8,128], index: 4, kind: output, shape index: {0}]
  %s5 = inlined_call_operand.vmem [shape: f32[1,128], index: 5, kind: output, shape index: {1}]
  %s6 = inlined_call_operand.vmem [shape: f32[1,128], index: 6, kind: output, shape index: {2}]
  %7 = xla_tuple %s4, %s5, %s6
  %s8 = sld [smem:[#allocation0]]
  $region62: #{embedding_model_forward.2} parent=0
    _
  %s10 = ssub.s32 1, %s8
  %s11 = scalar_select 0, %s10, %s8
  $region1: #{embedding_model_forward.2} parent=0
    #allocation2 [shape = 'u8[4096]{0}', space=vmem, size = 0x1000, scoped, tag = 'input window, operand 0, single buffered']
    #allocation3 [shape = 's32[1]{0}', space=sflag, size = 0x4, scoped, tag = 'scoped memory for embedding_model_forward.2']
    #allocation4 [shape = 'u8[4096]{0}', space=vmem, size = 0x1000, scoped, tag = 'input window, operand 1, single buffered']
    #allocation5 [shape = 's32[1]{0}', space=sflag, size = 0x4, scoped, tag = 'scoped memory for embedding_model_forward.2']
    #allocation6 [shape = 'u8[8192]{0}', space=vmem, size = 0x2000, scoped, tag = 'input window, operand 2, single buffered']
    #allocation7 [shape = 'u8[8192]{0}', space=vmem, size = 0x2000, scoped, tag = 'input window, operand 3, single buffered']
    #allocation8 [shape = 's32[1]{0}', space=sflag, size = 0x4, scoped, tag = 'scoped memory for embedding_model_forward.2']
    %12 = vsyncpa [#allocation3], 0
    %13 = vsyncpa [#allocation5], 0
    %14 = vsyncpa [#allocation8], 0
    // Predicated region
    $region2: #{embedding_model_forward.2} parent=1 // pred_check
      _
    $region3: #{embedding_model_forward.2} parent=1 // pred_check_branch
      %16 = sbr.rel (0) target = $region5
    $region4: #{embedding_model_forward.2} parent=1 // pred_region
      %18 = vsyncadd [#allocation3], 0
      %s20 = sshll.u32 %s0, 4
      %s21 = int_to_ptr.hbm [resolvable:$true] %s20
      %s22 = sshll.u32 [#allocation2], 4
      %s23 = int_to_ptr.vmem [resolvable:$true] %s22
      %25 = dma.hbm_to_vmem [thread:$0]  %s21, 128, %s23, [#allocation3]
    $region5: #{embedding_model_forward.2} parent=1 // pred_fallthru
      _
    // Predicated region
    $region6: #{embedding_model_forward.2} parent=1 // pred_check
      _
    $region7: #{embedding_model_forward.2} parent=1 // pred_check_branch
      %27 = sbr.rel (0) target = $region9
    $region8: #{embedding_model_forward.2} parent=1 // pred_region
      %29 = vsyncadd [#allocation5], 0
      %s31 = sshll.u32 %s1, 4
      %s32 = int_to_ptr.hbm [resolvable:$true] %s31
      %s33 = sshll.u32 [#allocation4], 4
      %s34 = int_to_ptr.vmem [resolvable:$true] %s33
      %36 = dma.hbm_to_vmem [thread:$0]  %s32, 128, %s34, [#allocation5]
    $region9: #{embedding_model_forward.2} parent=1 // pred_fallthru
      _
    // Predicated region
    $region10: #{embedding_model_forward.2} parent=1 // pred_check
      _
    $region11: #{embedding_model_forward.2} parent=1 // pred_check_branch
      %38 = sbr.rel (0) target = $region13
    $region12: #{embedding_model_forward.2} parent=1 // pred_region
      %40 = vsyncadd [#allocation5], 0
      %s41 = sshll.u32 %s2, 4
      %s42 = int_to_ptr.hbm [resolvable:$true] %s41
      %s43 = sshll.u32 [#allocation6], 4
      %s44 = int_to_ptr.vmem [resolvable:$true] %s43
      %49 = dma.hbm_to_vmem [thread:$0]  %s42, 256, %s44, [#allocation5], 64, 64, 4
    $region13: #{embedding_model_forward.2} parent=1 // pred_fallthru
      _
    // Predicated region
    $region14: #{embedding_model_forward.2} parent=1 // pred_check
      _
    $region15: #{embedding_model_forward.2} parent=1 // pred_check_branch
      %51 = sbr.rel (0) target = $region17
    $region16: #{embedding_model_forward.2} parent=1 // pred_region
      %53 = vsyncadd [#allocation8], 0
      %s54 = sshll.u32 %s3, 4
      %s55 = int_to_ptr.hbm [resolvable:$true] %s54
      %s56 = sshll.u32 [#allocation7], 4
      %s57 = int_to_ptr.vmem [resolvable:$true] %s56
      %62 = dma.hbm_to_vmem [thread:$0]  %s55, 256, %s57, [#allocation8], 64, 64, 4
    $region17: #{embedding_model_forward.2} parent=1 // pred_fallthru
      _
    // Predicated region
    $region18: #{embedding_model_forward.2} parent=1 // pred_check
      _
    $region19: #{embedding_model_forward.2} parent=1 // pred_check_branch
      %64 = sbr.rel (0) target = $region21
    $region20: #{embedding_model_forward.2} parent=1 // pred_region
      %66 = dma.done [#allocation3], 128
    $region21: #{embedding_model_forward.2} parent=1 // pred_fallthru
      _
    // Predicated region
    $region22: #{embedding_model_forward.2} parent=1 // pred_check
      _
    $region23: #{embedding_model_forward.2} parent=1 // pred_check_branch
      %68 = sbr.rel (0) target = $region25
    $region24: #{embedding_model_forward.2} parent=1 // pred_region
      %70 = dma.done [#allocation5], 128
    $region25: #{embedding_model_forward.2} parent=1 // pred_fallthru
      _
    // Predicated region
    $region26: #{embedding_model_forward.2} parent=1 // pred_check
      _
    $region27: #{embedding_model_forward.2} parent=1 // pred_check_branch
      %72 = sbr.rel (0) target = $region29
    $region28: #{embedding_model_forward.2} parent=1 // pred_region
      %74 = dma.done [#allocation5], 256
    $region29: #{embedding_model_forward.2} parent=1 // pred_fallthru
      _
    // Predicated region
    $region30: #{embedding_model_forward.2} parent=1 // pred_check
      _
    $region31: #{embedding_model_forward.2} parent=1 // pred_check_branch
      %76 = sbr.rel (0) target = $region33
    $region32: #{embedding_model_forward.2} parent=1 // pred_region
      %78 = dma.done [#allocation8], 256
    $region33: #{embedding_model_forward.2} parent=1 // pred_fallthru
      _
    %v80 = vld [vmem:[#allocation2] sm:$0xff]
    %v81 = vpack.c.bf16 %v80, %v80
    %v82 = vld [vmem:[#allocation4] sm:$0xff]
    %v83 = vpack.c.bf16 %v82, %v82
    %v84 = vld [vmem:[#allocation6] sm:$0xf]
    %v85 = vld [vmem:[#allocation6 + $0x4] sm:$0xf]
    %v86 = vld [vmem:[#allocation6 + $0x8] sm:$0xf]
    %v87 = vld [vmem:[#allocation6 + $0xc] sm:$0xf]
    %v88 = vld [vmem:[#allocation7] sm:$0xf]
    %v89 = vld [vmem:[#allocation7 + $0x4] sm:$0xf]
    %v90 = vld [vmem:[#allocation7 + $0x8] sm:$0xf]
    %v91 = vld [vmem:[#allocation7 + $0xc] sm:$0xf]
    %v96 = vunpack.c.l.b16 %v88
    %v97 = vunpack.c.l.b16 %v89
    %v98 = vunpack.c.l.b16 %v90
    %v99 = vunpack.c.l.b16 %v91
    %v100 = vpack.c.b16 %v97, %v96
    %v101 = vpack.c.b16 %v99, %v98
    %vm104 = vcmask 261120
    %v106 = vsel %vm104, %v83, 0
    %108 = vmatpush.bf16.msra.mxu0 0
    %109 = vmatpush.bf16.msra.mxu0 0
    %110 = vmatpush.bf16.msra.mxu0 0
    %111 = vmatpush.bf16.msra.mxu0 0
    %112 = vmatpush.bf16.msra.mxu0 0
    %113 = vmatpush.bf16.msra.mxu0 0
    %114 = vmatpush.bf16.msra.mxu0 %v101
    %115 = vmatpush.bf16.msra.mxu0 %v100
    %116 = vmatmul.bf16.gmra.mxu0 %v106
    %v117 = vpop.f32.mrf.mxu0
    %v118 = vadd.f32 0.0, %v117
    %v119 = vpop.f32.mrf.mxu0
    %120 = vdwg.mxu0
    %v125 = vunpack.c.l.b16 %v84
    %v126 = vunpack.c.l.b16 %v85
    %v127 = vunpack.c.l.b16 %v86
    %v128 = vunpack.c.l.b16 %v87
    %v129 = vpack.c.b16 %v126, %v125
    %v130 = vpack.c.b16 %v128, %v127
    %v134 = vsel %vm104, %v81, 0
    %136 = vmatpush.bf16.msra.mxu0 0
    %137 = vmatpush.bf16.msra.mxu0 0
    %138 = vmatpush.bf16.msra.mxu0 0
    %139 = vmatpush.bf16.msra.mxu0 0
    %140 = vmatpush.bf16.msra.mxu0 0
    %141 = vmatpush.bf16.msra.mxu0 0
    %142 = vmatpush.bf16.msra.mxu0 %v130
    %143 = vmatpush.bf16.msra.mxu0 %v129
    %144 = vmatmul.bf16.gmra.mxu0 %v134
    %v145 = vpop.f32.mrf.mxu0
    %v146 = vadd.f32 %v118, %v145
    %v147 = vpop.f32.mrf.mxu0
    %148 = vdwg.mxu0
    %149 = vst [vmem:[%s4] sm:$0xff] %v146
    %p150 = scmp.eq.s32.totalorder 0, 0
    // Predicated region
    $region34: #{embedding_model_forward.2} parent=1 // pred_check
      %p151 = pneg %p150
    $region35: #{embedding_model_forward.2} parent=1 // pred_check_branch
      %153 = sbr.rel (%p151) target = $region37
    $region36: #{embedding_model_forward.2} parent=1 // pred_region
      %154 = vst [vmem:[%s5] sm:$0x1] 0.0
      %155 = vst [vmem:[%s6] sm:$0x1] 0.0
    $region37: #{embedding_model_forward.2} parent=1 // pred_fallthru
      _
    %v156 = vld [vmem:[%s5] sm:$0x1]
    %v157 = vrot.slane %v146, 4
    %v158 = vadd.f32 %v146, %v157
    %v159 = vrot.slane %v158, 2
    %v160 = vadd.f32 %v158, %v159
    %v161 = vrot.slane %v160, 1
    %v162 = vadd.f32 %v160, %v161
    %v163 = vadd.f32 %v156, %v162
    %164 = vst [vmem:[%s5] sm:$0x1] %v163
    %v165 = vld [vmem:[%s6] sm:$0x1]
    %v166 = vmul.f32 %v146, %v146
    %v167 = vrot.slane %v166, 4
    %v168 = vadd.f32 %v166, %v167
    %v169 = vrot.slane %v168, 2
    %v170 = vadd.f32 %v168, %v169
    %v171 = vrot.slane %v170, 1
    %v172 = vadd.f32 %v170, %v171
    %v173 = vadd.f32 %v165, %v172
    %174 = vst [vmem:[%s6] sm:$0x1] %v173
    // Predicated region
    $region38: #{embedding_model_forward.2} parent=1 // pred_check
      _
    $region39: #{embedding_model_forward.2} parent=1 // pred_check_branch
      %176 = sbr.rel (0) target = $region41
    $region40: #{embedding_model_forward.2} parent=1 // pred_region
      _
    $region41: #{embedding_model_forward.2} parent=1 // pred_fallthru
      _
    // Predicated region
    $region42: #{embedding_model_forward.2} parent=1 // pred_check
      _
    $region43: #{embedding_model_forward.2} parent=1 // pred_check_branch
      %178 = sbr.rel (0) target = $region45
    $region44: #{embedding_model_forward.2} parent=1 // pred_region
      _
    $region45: #{embedding_model_forward.2} parent=1 // pred_fallthru
      _
    // Predicated region
    $region46: #{embedding_model_forward.2} parent=1 // pred_check
      _
    $region47: #{embedding_model_forward.2} parent=1 // pred_check_branch
      %180 = sbr.rel (0) target = $region49
    $region48: #{embedding_model_forward.2} parent=1 // pred_region
      _
    $region49: #{embedding_model_forward.2} parent=1 // pred_fallthru
      _
    // Predicated region
    $region50: #{embedding_model_forward.2} parent=1 // pred_check
      _
    $region51: #{embedding_model_forward.2} parent=1 // pred_check_branch
      %182 = sbr.rel (0) target = $region53
    $region52: #{embedding_model_forward.2} parent=1 // pred_region
      _
    $region53: #{embedding_model_forward.2} parent=1 // pred_fallthru
      _
    // Predicated region
    $region54: #{embedding_model_forward.2} parent=1 // pred_check
      _
    $region55: #{embedding_model_forward.2} parent=1 // pred_check_branch
      %184 = sbr.rel (0) target = $region57
    $region56: #{embedding_model_forward.2} parent=1 // pred_region
      _
    $region57: #{embedding_model_forward.2} parent=1 // pred_fallthru
      _
    // Predicated region
    $region58: #{embedding_model_forward.2} parent=1 // pred_check
      _
    $region59: #{embedding_model_forward.2} parent=1 // pred_check_branch
      %186 = sbr.rel (0) target = $region61
    $region60: #{embedding_model_forward.2} parent=1 // pred_region
      _
    $region61: #{embedding_model_forward.2} parent=1 // pred_fallthru
      _
    %187 = vsyncpa [#allocation3], 1
    %188 = vsyncpa [#allocation5], 1
    %189 = vsyncpa [#allocation8], 1

</llo_original>
